<compile_context>
chip_gen: v7x
topology: tpu7x:2x2x1
jax: 0.10.0
libtpu: 0.0.40
codegen_flags: <defaults>
</compile_context>

<pallas_src>
import functools

import jax
import jax.numpy as jnp
from jax.experimental import pallas as pl
from jax.experimental.pallas import tpu as pltpu


def _cdiv(a, b):
    return (a + b - 1) // b


def _round_up(a, b):
    return _cdiv(a, b) * b


def _vmem_capacity_bytes():
    """Physical VMEM of the local TPU; conservative v7x default on failure."""
    try:
        cap = getattr(pltpu.get_tpu_info(), "vmem_capacity_bytes", None)
        if cap is not None:
            cap = int(cap)
            if cap > 0:
                return cap
    except Exception:
        pass
    return 64 * 1024 * 1024          # v7x physical VMEM (smallest generation)


def _num_tensorcores():
    """TensorCores per chip (1 on v5e/v6e, 2 on v7x); safe fallback = 1."""
    try:
        info = pltpu.get_tpu_info()
        for attr in ("num_cores", "core_count", "num_tensorcores"):
            v = getattr(info, attr, None)
            if isinstance(v, int) and v > 0:
                return v
    except Exception:
        pass
    try:
        v = getattr(jax.devices()[0], "num_cores", None)
        if isinstance(v, int) and v > 0:
            return v
    except Exception:
        pass
    return 1


def _label_smoothing_kernel(pred_ref, tgt_ref, out_ref, acc_ref, *,
                            classes, confidence, off_value, tile_n,
                            tiles_per_core, n_valid):
    p = pl.program_id(0)          # parallel (core) axis
    t = pl.program_id(1)          # batch-reduction axis

    @pl.when(t == 0)
    def _init():
        acc_ref[...] = jnp.zeros_like(acc_ref)

    x = pred_ref[...].astype(jnp.float32)          # (tile_n, C), cast in-kernel
    tgt = tgt_ref[...]                             # (tile_n, 1) int32

    # Stable log-softmax pieces: logp = z - lse, z = x - max.
    m = jnp.max(x, axis=-1, keepdims=True)         # (tile_n, 1)
    z = x - m
    lse = jnp.log(jnp.sum(jnp.exp(z), axis=-1, keepdims=True))   # (tile_n, 1)

    # z at the target column via one masked reduce (no true_dist tensor).
    col = jax.lax.broadcasted_iota(jnp.int32, z.shape, 1)
    z_t = jnp.sum(jnp.where(col == tgt, z, 0.0), axis=-1, keepdims=True)
    sum_z = jnp.sum(z, axis=-1, keepdims=True)

    # loss_row = -sum_c true_dist * logp   (true_dist eliminated algebraically)
    loss = (-off_value * (sum_z - classes * lse)
            - (confidence - off_value) * (z_t - lse))            # (tile_n, 1)

    # Select (NOT multiply-mask) so NaN/Inf from the unpadded ragged tail and
    # from clamped (out-of-range) per-core tiles is dropped, never propagated.
    tile_idx = p * tiles_per_core + t
    rows = tile_idx * tile_n + jax.lax.broadcasted_iota(jnp.int32, loss.shape, 0)
    loss = jnp.where(rows < n_valid, loss, 0.0)

    acc_ref[...] += jnp.sum(loss, axis=(0, 1), keepdims=True)

    @pl.when(t == pl.num_programs(1) - 1)
    def _finalize():
        # Lane-dense single write of this core's partial sum.
        out_ref[...] = jnp.broadcast_to(acc_ref[...], out_ref.shape)


def label_smoothing_loss(pred, target, *, classes, smoothing=0.0, weight=None):
    """pred: (N, C) logits; target: (N,) int labels. Returns scalar f32 loss."""
    assert 0.0 <= smoothing < 1.0
    # TODO(synk): optional per-class `weight` multiplier not implemented (weight=None path).
    assert weight is None
    n, c = pred.shape
    assert c == classes

    confidence = 1.0 - smoothing
    off_value = smoothing / (classes - 1) if classes > 1 else 0.0

    itemsize = jnp.dtype(pred.dtype).itemsize

    # ---- Row-tile sizing: purely by bytes. Live VMEM per tile ~=
    #      2 x native-dtype input tile (double buffered)
    #      + ~6 x f32 (tile_n, C) intermediates (cast, z, exp, iota, where, ...).
    #      Budget ~40% of physical VMEM; explicit vmem_limit_bytes below it. ----
    vmem_cap = _vmem_capacity_bytes()
    bytes_per_row = c * (2 * itemsize + 6 * 4)
    budget = max(4 * 1024 * 1024, int(vmem_cap * 0.4))
    sub = max(8, 32 // itemsize)                  # packed-sublane multiple of dtype
    tile_n = budget // max(1, bytes_per_row)
    tile_n = max(sub, (tile_n // sub) * sub)
    tile_n = min(tile_n, _round_up(n, sub))       # don't over-tile tiny batches

    # ---- Megacore split gated on real TC count (1 on v5e/v6e, 2 on v7x). ----
    n_tiles_total = _cdiv(n, tile_n)
    num_cores = _num_tensorcores()
    n_par = num_cores if (num_cores > 1 and n_tiles_total >= num_cores) else 1
    tiles_per_core = _cdiv(n_tiles_total, n_par)
    last_block = n_tiles_total - 1

    tgt2d = target.astype(jnp.int32).reshape(n, 1)

    kernel = functools.partial(
        _label_smoothing_kernel,
        classes=classes, confidence=confidence, off_value=off_value,
        tile_n=tile_n, tiles_per_core=tiles_per_core, n_valid=n)

    def row_block_map(p_, t_):
        # Clamp so the (possibly shorter) last core's extra steps re-read the
        # final valid block; those rows are masked out in-kernel.
        return (jnp.minimum(p_ * tiles_per_core + t_, last_block), 0)

    cost = pl.CostEstimate(
        flops=int(8 * n * c),
        transcendentals=int(n * c + n),
        bytes_accessed=int(n * c * itemsize + n * 4 + n_par * 8 * 128 * 4))

    out = pl.pallas_call(
        kernel,
        out_shape=jax.ShapeDtypeStruct((n_par * 8, 128), jnp.float32),
        grid=(n_par, tiles_per_core),
        in_specs=[
            pl.BlockSpec((tile_n, c), row_block_map),
            pl.BlockSpec((tile_n, 1), row_block_map),
        ],
        out_specs=pl.BlockSpec((8, 128), lambda p_, t_: (p_, 0)),
        scratch_shapes=[pltpu.VMEM((1, 1), jnp.float32)],
        compiler_params=pltpu.CompilerParams(
            dimension_semantics=("parallel", "arbitrary"),
            vmem_limit_bytes=int(vmem_cap * 0.85)),
        cost_estimate=cost,
    )(pred, tgt2d)

    partial_sums = out[0::8, 0]                    # one partial sum per core slice
    return jnp.sum(partial_sums) / n


if __name__ == "__main__":
    # N deliberately not a multiple of 8 to exercise the ragged-tail mask path.
    N, C = 10, 32
    smoothing = 0.1

    key = jax.random.PRNGKey(0)
    k1, k2 = jax.random.split(key)
    pred = jax.random.normal(k1, (N, C), dtype=jnp.float32)
    target = jax.random.randint(k2, (N,), 0, C, dtype=jnp.int32)

    def ref_loss(p32, tgt):
        logp = jax.nn.log_softmax(p32, axis=-1)
        td = jnp.full((N, C), smoothing / (C - 1), dtype=jnp.float32)
        td = td.at[jnp.arange(N), tgt].set(1.0 - smoothing)
        return jnp.mean(jnp.sum(-td * logp, axis=-1))

    # f32 path
    loss = label_smoothing_loss(pred, target, classes=C, smoothing=smoothing)
    loss = jax.block_until_ready(loss)
    ref = ref_loss(pred, target)
    assert jnp.allclose(loss, ref, rtol=1e-5, atol=1e-5), (loss, ref)

    # bf16 path (exercises native-dtype HBM read + 16-row sublane rounding).
    pred_bf16 = pred.astype(jnp.bfloat16)
    loss_bf16 = label_smoothing_loss(pred_bf16, target, classes=C,
                                     smoothing=smoothing)
    loss_bf16 = jax.block_until_ready(loss_bf16)
    ref_bf16 = ref_loss(pred_bf16.astype(jnp.float32), target)
    assert jnp.allclose(loss_bf16, ref_bf16, rtol=1e-4, atol=1e-4), (loss_bf16, ref_bf16)

    print("KERNEL_OK")
</pallas_src>

<mosaic_0001>
module attributes {stable_mosaic.version = 11 : i64} {
  func.func @_label_smoothing_kernel(%arg0: i32, %arg1: i32, %arg2: memref<16x32xf32, #tpu.memory_space<vmem>>, %arg3: memref<16x1xi32, #tpu.memory_space<vmem>>, %arg4: memref<8x128xf32, #tpu.memory_space<vmem>>, %arg5: memref<1x1xf32, #tpu.memory_space<vmem>>) attributes {dimension_semantics = [#tpu.dimension_semantics<parallel>, #tpu.dimension_semantics<arbitrary>], iteration_bounds = array<i64: 1, 1>, scalar_prefetch = 0 : i64, scratch_operands = 1 : i64, tpu.core_type = #tpu.core_type<tc>, window_params = [{transform_indices = @transform_0, window_bounds = array<i64: 16, 32>}, {transform_indices = @transform_1, window_bounds = array<i64: 16, 1>}, {transform_indices = @transform_2, window_bounds = array<i64: 8, 128>}]} {
    %c0_i32 = arith.constant 0 : i32
    %0 = arith.cmpi eq, %arg1, %c0_i32 : i32
    %1 = arith.extui %0 : i1 to i32
    %c0_i32_0 = arith.constant 0 : i32
    %2 = arith.cmpi ne, %1, %c0_i32_0 : i32
    scf.if %2 {
      %cst_19 = arith.constant 0.000000e+00 : f32
      %52 = vector.broadcast %cst_19 : f32 to vector<1x1xf32>
      %c0_20 = arith.constant 0 : index
      %c0_21 = arith.constant 0 : index
      %53 = vector.load %arg5[%c0_20, %c0_21] : memref<1x1xf32, #tpu.memory_space<vmem>>, vector<1x1xf32>
      tpu.vector_store %arg5[%c0_20, %c0_21], %52 {strides = array<i32>} : memref<1x1xf32, #tpu.memory_space<vmem>>, vector<1x1xf32>,
    } else {
    }
    %c0 = arith.constant 0 : index
    %c0_1 = arith.constant 0 : index
    %3 = vector.load %arg2[%c0, %c0_1] : memref<16x32xf32, #tpu.memory_space<vmem>>, vector<16x32xf32>
    %c0_2 = arith.constant 0 : index
    %c0_3 = arith.constant 0 : index
    %4 = vector.load %arg3[%c0_2, %c0_3] : memref<16x1xi32, #tpu.memory_space<vmem>>, vector<16x1xi32>
    %cst = arith.constant dense<0xFF800000> : vector<16xf32>
    %5 = vector.multi_reduction <maximumf>, %3, %cst [1] : vector<16x32xf32> to vector<16xf32>
    %6 = vector.shape_cast %5 : vector<16xf32> to vector<16x1xf32>
    %7 = vector.broadcast %6 : vector<16x1xf32> to vector<16x32xf32>
    %8 = arith.subf %3, %7 : vector<16x32xf32>
    %9 = math.exp %8 : vector<16x32xf32>
    %cst_4 = arith.constant dense<0.000000e+00> : vector<16xf32>
    %10 = vector.multi_reduction <add>, %9, %cst_4 [1] : vector<16x32xf32> to vector<16xf32>
    %11 = vector.shape_cast %10 : vector<16xf32> to vector<16x1xf32>
    %12 = math.log %11 : vector<16x1xf32>
    %13 = tpu.iota {dimensions = array<i32: 1>} : vector<16x32xi32>
    %14 = vector.broadcast %4 : vector<16x1xi32> to vector<16x32xi32>
    %15 = arith.cmpi eq, %13, %14 : vector<16x32xi32>
    %cst_5 = arith.constant 0.000000e+00 : f32
    %16 = vector.broadcast %cst_5 : f32 to vector<16x32xf32>
    %17 = arith.select %15, %8, %16 : vector<16x32xi1>, vector<16x32xf32>
    %cst_6 = arith.constant dense<0.000000e+00> : vector<16xf32>
    %18 = vector.multi_reduction <add>, %17, %cst_6 [1] : vector<16x32xf32> to vector<16xf32>
    %19 = vector.shape_cast %18 : vector<16xf32> to vector<16x1xf32>
    %cst_7 = arith.constant dense<0.000000e+00> : vector<16xf32>
    %20 = vector.multi_reduction <add>, %8, %cst_7 [1] : vector<16x32xf32> to vector<16xf32>
    %21 = vector.shape_cast %20 : vector<16xf32> to vector<16x1xf32>
    %cst_8 = arith.constant 3.200000e+01 : f32
    %22 = vector.broadcast %cst_8 : f32 to vector<16x1xf32>
    %23 = arith.mulf %22, %12 : vector<16x1xf32>
    %24 = arith.subf %21, %23 : vector<16x1xf32>
    %cst_9 = arith.constant -0.0032258064 : f32
    %25 = vector.broadcast %cst_9 : f32 to vector<16x1xf32>
    %26 = arith.mulf %25, %24 : vector<16x1xf32>
    %27 = arith.subf %19, %12 : vector<16x1xf32>
    %cst_10 = arith.constant 0.896774172 : f32
    %28 = vector.broadcast %cst_10 : f32 to vector<16x1xf32>
    %29 = arith.mulf %28, %27 : vector<16x1xf32>
    %30 = arith.subf %26, %29 : vector<16x1xf32>
    %c1_i32 = arith.constant 1 : i32
    %31 = arith.muli %arg0, %c1_i32 : i32
    %32 = arith.addi %31, %arg1 : i32
    %c16_i32 = arith.constant 16 : i32
    %33 = arith.muli %32, %c16_i32 : i32
    %34 = tpu.iota {dimensions = array<i32: 0>} : vector<16x1xi32>
    %35 = vector.broadcast %33 : i32 to vector<16x1xi32>
    %36 = arith.addi %35, %34 : vector<16x1xi32>
    %c10_i32 = arith.constant 10 : i32
    %37 = vector.broadcast %c10_i32 : i32 to vector<16x1xi32>
    %38 = arith.cmpi slt, %36, %37 : vector<16x1xi32>
    %cst_11 = arith.constant 0.000000e+00 : f32
    %39 = vector.broadcast %cst_11 : f32 to vector<16x1xf32>
    %40 = arith.select %38, %30, %39 : vector<16x1xi1>, vector<16x1xf32>
    %c0_12 = arith.constant 0 : index
    %c0_13 = arith.constant 0 : index
    %41 = vector.load %arg5[%c0_12, %c0_13] : memref<1x1xf32, #tpu.memory_space<vmem>>, vector<1x1xf32>
    %42 = vector.shape_cast %40 : vector<16x1xf32> to vector<1x16x1xf32>
    %cst_14 = arith.constant dense<0.000000e+00> : vector<1xf32>
    %43 = vector.multi_reduction <add>, %42, %cst_14 [1, 2] : vector<1x16x1xf32> to vector<1xf32>
    %44 = vector.shape_cast %43 : vector<1xf32> to vector<1x1x1xf32>
    %45 = vector.extract %44[0, 0, 0] : f32 from vector<1x1x1xf32>
    %46 = vector.broadcast %45 : f32 to vector<1x1xf32>
    %47 = arith.addf %41, %46 : vector<1x1xf32>
    %c0_15 = arith.constant 0 : index
    %c0_16 = arith.constant 0 : index
    %48 = vector.load %arg5[%c0_15, %c0_16] : memref<1x1xf32, #tpu.memory_space<vmem>>, vector<1x1xf32>
    tpu.vector_store %arg5[%c0_15, %c0_16], %47 {strides = array<i32>} : memref<1x1xf32, #tpu.memory_space<vmem>>, vector<1x1xf32>,
    %c0_i32_17 = arith.constant 0 : i32
    %49 = arith.cmpi eq, %arg1, %c0_i32_17 : i32
    %50 = arith.extui %49 : i1 to i32
    %c0_i32_18 = arith.constant 0 : i32
    %51 = arith.cmpi ne, %50, %c0_i32_18 : i32
    scf.if %51 {
      %c0_19 = arith.constant 0 : index
      %c0_20 = arith.constant 0 : index
      %52 = vector.load %arg5[%c0_19, %c0_20] : memref<1x1xf32, #tpu.memory_space<vmem>>, vector<1x1xf32>
      %53 = vector.shape_cast %52 : vector<1x1xf32> to vector<1x1xf32>
      %54 = vector.broadcast %53 : vector<1x1xf32> to vector<8x128xf32>
      %c0_21 = arith.constant 0 : index
      %c0_22 = arith.constant 0 : index
      %55 = vector.load %arg4[%c0_21, %c0_22] : memref<8x128xf32, #tpu.memory_space<vmem>>, vector<8x128xf32>
      tpu.vector_store %arg4[%c0_21, %c0_22], %54 {strides = array<i32>} : memref<8x128xf32, #tpu.memory_space<vmem>>, vector<8x128xf32>,
    } else {
    }
    return
  }
  func.func @transform_0(%arg0: i32, %arg1: i32) -> (i32, i32) {
    %c1_i32 = arith.constant 1 : i32
    %0 = arith.muli %arg0, %c1_i32 : i32
    %1 = arith.addi %0, %arg1 : i32
    %c0_i32 = arith.constant 0 : i32
    %2 = arith.minsi %1, %c0_i32 : i32
    %c0_i32_0 = arith.constant 0 : i32
    %c0_i32_1 = arith.constant 0 : i32
    return %2, %c0_i32_0 : i32, i32
  }
  func.func @transform_1(%arg0: i32, %arg1: i32) -> (i32, i32) {
    %c1_i32 = arith.constant 1 : i32
    %0 = arith.muli %arg0, %c1_i32 : i32
    %1 = arith.addi %0, %arg1 : i32
    %c0_i32 = arith.constant 0 : i32
    %2 = arith.minsi %1, %c0_i32 : i32
    %c0_i32_0 = arith.constant 0 : i32
    %c0_i32_1 = arith.constant 0 : i32
    return %2, %c0_i32_0 : i32, i32
  }
  func.func @transform_2(%arg0: i32, %arg1: i32) -> (i32, i32) {
    %c0_i32 = arith.constant 0 : i32
    %c0_i32_0 = arith.constant 0 : i32
    return %arg0, %c0_i32 : i32, i32
  }
}

</mosaic_0001>

<llo_original>
// kernel: tpu_custom_call.1
$region0: #{tpu_custom_call.1}
  #allocation0 [shape = 'u32[]', space=smem, size = 0x4, offset = 0x4, fixed_abs, tag = 'smem constant byte address 0x4 - core index']
  #allocation1 [shape = 'u32[144,128]{1,0:T(1,128)}', space=vmem, size = 0x12000, scoped, tag = 'internal scratch']
  #allocation2 [shape = 'f32[1,1]{1,0:T(1,128)}', space=vmem, size = 0x200, scoped, tag = 'scratch operand']
  %s0 = inlined_call_operand.vmem [shape: f32[10,32], index: 0, kind: input, shape index: {}]
  %s1 = inlined_call_operand.vmem [shape: s32[10,1], index: 1, kind: input, shape index: {}]
  %s2 = inlined_call_operand.hbm [shape: f32[8,128], index: 2, kind: output, shape index: {}]
  %s3 = sld [smem:[#allocation0]]
  $region26: #{tpu_custom_call.1} parent=0
    _
  %s5 = ssub.s32 1, %s3
  %s6 = scalar_select 0, %s5, %s3
  $region1: #{tpu_custom_call.1} parent=0
    #allocation3 [shape = 'u8[4096]{0}', space=vmem, size = 0x1000, scoped, tag = 'output window, operand 0, single buffered']
    #allocation4 [shape = 's32[1]{0}', space=sflag, size = 0x4, scoped, tag = 'scoped memory for tpu_custom_call.1']
    %7 = vsyncpa [#allocation4], 0
    // Predicated region
    $region2: #{tpu_custom_call.1} parent=1 // pred_check
      _
    $region3: #{tpu_custom_call.1} parent=1 // pred_check_branch
      %9 = sbr.rel (0) target = $region5
    $region4: #{tpu_custom_call.1} parent=1 // pred_region
      %s10 = sadd.s32 0, 0
      %p11 = scmp.lt.s32.totalorder %s10, 0
      %s12 = scalar_select %p11, %s10, 0
      %s13 = smul.u32 2, %s12
      %p14 = scmp.lt.s32.totalorder %s13, 1
      %s15 = scalar_select %p14, %s13, 1
      %s16 = smul.addr %s15, 8
      %s17 = scalar_lea.vmem %s0, %s16
      %s18 = sadd.s32 0, 0
      %p19 = scmp.lt.s32.totalorder %s18, 0
      %s20 = scalar_select %p19, %s18, 0
      %s21 = smul.u32 2, %s20
    $region5: #{tpu_custom_call.1} parent=1 // pred_fallthru
      _
    // Predicated region
    $region6: #{tpu_custom_call.1} parent=1 // pred_check
      _
    $region7: #{tpu_custom_call.1} parent=1 // pred_check_branch
      %23 = sbr.rel (0) target = $region9
    $region8: #{tpu_custom_call.1} parent=1 // pred_region
      %s24 = sadd.s32 0, 0
      %p25 = scmp.lt.s32.totalorder %s24, 0
      %s26 = scalar_select %p25, %s24, 0
      %s27 = smul.u32 2, %s26
      %p28 = scmp.lt.s32.totalorder %s27, 1
      %s29 = scalar_select %p28, %s27, 1
      %s30 = smul.addr %s29, 8
      %s31 = scalar_lea.vmem %s1, %s30
      %s32 = sadd.s32 0, 0
      %p33 = scmp.lt.s32.totalorder %s32, 0
      %s34 = scalar_select %p33, %s32, 0
      %s35 = smul.u32 2, %s34
    $region9: #{tpu_custom_call.1} parent=1 // pred_fallthru
      _
    %s36 = sadd.s32 0, 0
    %p37 = scmp.lt.s32.totalorder %s36, 0
    %s38 = scalar_select %p37, %s36, 0
    %s39 = smul.u32 2, %s38
    %p40 = scmp.lt.s32.totalorder %s39, 1
    %s41 = scalar_select %p40, %s39, 1
    %s42 = smul.addr %s41, 8
    %s43 = scalar_lea.vmem %s0, %s42
    %s44 = sadd.s32 0, 0
    %p45 = scmp.lt.s32.totalorder %s44, 0
    %s46 = scalar_select %p45, %s44, 0
    %s47 = smul.u32 2, %s46
    %p48 = scmp.lt.s32.totalorder %s47, 1
    %s49 = scalar_select %p48, %s47, 1
    %s50 = smul.addr %s49, 8
    %s51 = scalar_lea.vmem %s1, %s50
    %s52 = sadd.s32 0, 0
    %p53 = scmp.lt.s32.totalorder %s52, 0
    %s54 = scalar_select %p53, %s52, 0
    %s55 = smul.u32 2, %s54
    %p56 = scmp.lt.s32.totalorder %s55, 1
    %s57 = scalar_select %p56, %s55, 1
    %s58 = smul.addr %s57, 8
    %s59 = scalar_lea.vmem %s0, %s58
    %s60 = sadd.s32 0, 0
    %p61 = scmp.lt.s32.totalorder %s60, 0
    %s62 = scalar_select %p61, %s60, 0
    %s63 = smul.u32 2, %s62
    %s64 = sadd.s32 0, 0
    %p65 = scmp.lt.s32.totalorder %s64, 0
    %s66 = scalar_select %p65, %s64, 0
    %s67 = smul.u32 2, %s66
    %p68 = scmp.lt.s32.totalorder %s67, 1
    %s69 = scalar_select %p68, %s67, 1
    %s70 = smul.addr %s69, 8
    %s71 = scalar_lea.vmem %s1, %s70
    %s72 = sadd.s32 0, 0
    %p73 = scmp.lt.s32.totalorder %s72, 0
    %s74 = scalar_select %p73, %s72, 0
    %s75 = smul.u32 2, %s74
    %p76 = scmp.eq.s32.totalorder 0, 0
    // Predicated region
    $region10: #{tpu_custom_call.1} parent=1 // pred_check
      %p77 = pneg %p76
    $region11: #{tpu_custom_call.1} parent=1 // pred_check_branch
      %79 = sbr.rel (%p77) target = $region13
    $region12: #{tpu_custom_call.1} parent=1 // pred_region
      %vm80 = vcmask 0
      %81 = vst.msk [vmem:[#allocation2] sm:$0x1] %vm80, 0.0
    $region13: #{tpu_custom_call.1} parent=1 // pred_fallthru
      _
    %v82 = vld [vmem:[%s59] sm:$0xff]
    %v83 = vld [vmem:[%s59 + $0x8] sm:$0xff]
    %v84 = vld [vmem:[%s71] sm:$0xff]
    %v85 = vld [vmem:[%s71 + $0x8] sm:$0xff]
    %vm86 = vcmask 261120
    %v87 = vsel %vm86, %v82, -inf
    %88 = vmax.xlane.f32.xlu0 %v87
    %v89 = vpop.xlane.xlu0 %88
    %v90 = vsel %vm86, %v83, -inf
    %91 = vmax.xlane.f32.xlu0 %v90
    %v92 = vpop.xlane.xlu0 %91
    %v93 = vsub.f32 %v82, %v89
    %v94 = vsub.f32 %v83, %v92
    %v95 = vmul.f32 %v93, 1.442695
    %v96 = vpow.pop %v95
    %v97 = vmul.f32 %v94, 1.442695
    %v98 = vpow.pop %v97
    %v99 = vsel %vm86, %v96, 0.0
    %100 = vadd.xlane.f32.xlu0 %v99
    %v101 = vpop.xlane.xlu0 %100
    %v102 = vsel %vm86, %v98, 0.0
    %103 = vadd.xlane.f32.xlu0 %v102
    %v104 = vpop.xlane.xlu0 %103
    %v105 = vlog2.pop %v101
    %v106 = vmul.f32 %v105, 0.6931472
    %v107 = vlog2.pop %v104
    %v108 = vmul.f32 %v107, 0.6931472
    %v109 = vlaneseq
    %v110 = vand.u32 %v109, 127
    %111 = vset.pattern.permute.xlu0 0
    %112 = vperm.xlu0 %111, %v84
    %v113 = vpop.permute.xlu0 %112
    %114 = vset.pattern.permute.xlu0 0
    %115 = vperm.xlu0 %114, %v85
    %v116 = vpop.permute.xlu0 %115
    %vm117 = vcmp.eq.s32.totalorder %v110, %v113
    %vm118 = vcmp.eq.s32.totalorder %v110, %v116
    %v119 = vsel %vm117, %v93, 0.0
    %v120 = vsel %vm118, %v94, 0.0
    %v121 = vsel %vm86, %v119, 0.0
    %122 = vadd.xlane.f32.xlu0 %v121
    %v123 = vpop.xlane.xlu0 %122
    %v124 = vsel %vm86, %v120, 0.0
    %125 = vadd.xlane.f32.xlu0 %v124
    %v126 = vpop.xlane.xlu0 %125
    %v127 = vsel %vm86, %v93, 0.0
    %128 = vadd.xlane.f32.xlu0 %v127
    %v129 = vpop.xlane.xlu0 %128
    %v130 = vsel %vm86, %v94, 0.0
    %131 = vadd.xlane.f32.xlu0 %v130
    %v132 = vpop.xlane.xlu0 %131
    %v133 = vmul.f32 %v106, 32.0
    %v134 = vmul.f32 %v108, 32.0
    %v135 = vsub.f32 %v129, %v133
    %v136 = vsub.f32 %v132, %v134
    %v137 = vmul.f32 %v135, -0.0032258064
    %v138 = vmul.f32 %v136, -0.0032258064
    %v139 = vsub.f32 %v123, %v106
    %v140 = vsub.f32 %v126, %v108
    %v141 = vmul.f32 %v139, 0.8967742
    %v142 = vmul.f32 %v140, 0.8967742
    %v143 = vsub.f32 %v137, %v141
    %v144 = vsub.f32 %v138, %v142
    %s145 = sadd.s32 0, 0
    %s146 = smul.u32 %s145, 16
    %v147 = vlaneseq
    %v148 = vshrl.u32 %v147, 7
    %v149 = vadd.s32 %v148, 8
    %v150 = vstv %s146
    %v151 = vadd.s32 %v150, %v148
    %v152 = vadd.s32 %v150, %v149
    %vm153 = vcmp.lt.s32.totalorder %v151, 10
    %vm154 = vcmp.lt.s32.totalorder %v152, 10
    %v155 = vsel %vm153, %v143, 0.0
    %v156 = vsel %vm154, %v144, 0.0
    %v157 = vld [vmem:[#allocation2] sm:$0x1]
    %vm158 = vcmask 7168
    %v159 = vsel %vm158, %v155, 0.0
    %v160 = vsel %vm158, %v156, 0.0
    %v161 = vadd.f32 %v159, %v160
    %162 = vadd.xlane.f32.xlu0 %v161
    %v163 = vpop.xlane.xlu0 %162
    %v164 = vrot.slane %v163, 4
    %v165 = vadd.f32 %v163, %v164
    %v166 = vrot.slane %v165, 2
    %v167 = vadd.f32 %v165, %v166
    %v168 = vrot.slane %v167, 1
    %v169 = vadd.f32 %v167, %v168
    %s170 = vtos %v169
    %v171 = vstv %s170
    %v172 = vadd.f32 %v157, %v171
    %vm173 = vcmask 0
    %174 = vst.msk [vmem:[#allocation2] sm:$0x1] %vm173, %v172
    // Predicated region
    $region14: #{tpu_custom_call.1} parent=1 // pred_check
      %p175 = pneg %p76
    $region15: #{tpu_custom_call.1} parent=1 // pred_check_branch
      %177 = sbr.rel (%p175) target = $region17
    $region16: #{tpu_custom_call.1} parent=1 // pred_region
      %v178 = vld [vmem:[#allocation2] sm:$0x1]
      %v180 = vlaneseq
      %v181 = vshrl.u32 %v180, 7
      %v182 = vsub.s32 0, %v181
      %v183 = vrot.slane %v178, %v182
      %184 = vset.pattern.permute.xlu0 0
      %185 = vperm.xlu0 %184, %v183
      %v186 = vpop.permute.xlu0 %185
      %188 = vst [vmem:[#allocation3] sm:$0xff] %v186
    $region17: #{tpu_custom_call.1} parent=1 // pred_fallthru
      _
    // Predicated region
    $region18: #{tpu_custom_call.1} parent=1 // pred_check
      _
    $region19: #{tpu_custom_call.1} parent=1 // pred_check_branch
      %190 = sbr.rel (0) target = $region21
    $region20: #{tpu_custom_call.1} parent=1 // pred_region
      %s192 = ssub.s32 128, 128
      %193 = vsyncadd [#allocation4], %s192
      %s195 = sshll.u32 [#allocation3], 4
      %s196 = int_to_ptr.vmem [resolvable:$true] %s195
      %198 = dma.vmem_to_hbm [thread:$0]  %s196, 128, %s2, [#allocation4]
    $region21: #{tpu_custom_call.1} parent=1 // pred_fallthru
      _
    // Predicated region
    $region22: #{tpu_custom_call.1} parent=1 // pred_check
      _
    $region23: #{tpu_custom_call.1} parent=1 // pred_check_branch
      %200 = sbr.rel (0) target = $region25
    $region24: #{tpu_custom_call.1} parent=1 // pred_region
      %201 = dma.done [#allocation4], 128
    $region25: #{tpu_custom_call.1} parent=1 // pred_fallthru
      _
    %202 = vsyncpa [#allocation4], 1

</llo_original>
